<compile_context>
chip_gen: v7x
topology: tpu7x:2x2x1
jax: 0.10.0
libtpu: 0.0.40
codegen_flags: <defaults>
</compile_context>

<pallas_src>
import functools

import jax
import jax.numpy as jnp
from jax.experimental import pallas as pl
from jax.experimental.pallas import tpu as pltpu


def _round_up(x, m):
    return ((x + m - 1) // m) * m


def gate_kernel(x_ref, h_ref, wx_ref, wh_ref, b_ref, o_ref, *, activation):
    # In-kernel cast of the MXU operands (no wrapper-side astype HBM pass).
    xa = x_ref[...].astype(wx_ref.dtype)
    ha = h_ref[...].astype(wh_ref.dtype)
    # Two MXU pushes accumulated in f32; ~same cost as one fused-K push but
    # avoids the wrapper-side [x | h] concat HBM pass.
    acc = jnp.dot(xa, wx_ref[...], preferred_element_type=jnp.float32)
    acc = acc + jnp.dot(ha, wh_ref[...], preferred_element_type=jnp.float32)
    acc = acc + b_ref[...]                 # folded bias (bx + bh), f32, one VPU add
    if activation == "sigmoid":
        acc = jax.nn.sigmoid(acc)          # EUP transcendental, f32
    else:                                  # tanh
        acc = jnp.tanh(acc)
    o_ref[...] = acc.astype(o_ref.dtype)


def prepare_gate_params(wx, bx, wh, bh, *, compute_dtype=jnp.bfloat16):
    """One-time (init-time) parameter prep. NOT part of the per-step forward.

    wx: (out_dim, in_dim), wh: (out_dim, hidden_dim)  -- PyTorch Linear layout.
    Returns transposed, lane-padded weights in `compute_dtype` (default bf16
    MXU operands) and the folded f32 bias bx + bh, padded to out_pad lanes.
    """
    out_dim, in_dim = wx.shape
    hidden_dim = wh.shape[1]
    out_pad = _round_up(out_dim, 128)              # lane-dense output width

    wx_t = jnp.transpose(wx)                       # (in_dim, out_dim)
    wh_t = jnp.transpose(wh)                       # (hidden_dim, out_dim)
    b = (bx + bh).reshape(1, out_dim).astype(jnp.float32)
    if out_pad != out_dim:
        pad = out_pad - out_dim
        wx_t = jnp.pad(wx_t, ((0, 0), (0, pad)))
        wh_t = jnp.pad(wh_t, ((0, 0), (0, pad)))
        b = jnp.pad(b, ((0, 0), (0, pad)))
    if compute_dtype is not None:
        wx_t = wx_t.astype(compute_dtype)
        wh_t = wh_t.astype(compute_dtype)
    return dict(wx=wx_t, wh=wh_t, b=b, in_dim=in_dim, hidden_dim=hidden_dim,
                out_dim=out_dim, out_pad=out_pad)


def gate_forward(x, h, wx, wh, b, *, out_dim, activation="sigmoid",
                 tile_b=256, tile_n=512, out_dtype=None):
    """x: (B, in_dim), h: (B, hidden_dim); wx/wh/b from prepare_gate_params.
    Returns (B, out_dim) in `out_dtype` (default: x.dtype; pass bf16 to halve
    output HBM traffic when the consumer accepts it)."""
    activation = activation.lower()
    assert activation in ("sigmoid", "tanh")
    B, in_dim = x.shape
    hidden_dim = h.shape[1]
    out_pad = wx.shape[1]
    assert wx.shape[0] == in_dim and wh.shape == (hidden_dim, out_pad)
    assert b.shape == (1, out_pad)
    out_dtype = x.dtype if out_dtype is None else out_dtype

    # Tile sizes: batch tile is a multiple of 8 (sublanes), N tile a multiple
    # of 128 (lanes).  No wrapper-side padding: pl.cdiv grids let the last
    # partial block hang over the edge; its stores are masked by Pallas.
    tb = _round_up(min(tile_b, B), 8)
    tn = min(_round_up(tile_n, 128), out_pad)
    nb = pl.cdiv(B, tb)
    nn = pl.cdiv(out_pad, tn)
    # v7x has 2 TensorCores sharded over the "parallel" axes: expose >= 2 grid
    # tiles when the batch allows it (no-op on v5e/v6e and for tiny batches).
    if nb * nn < 2 and B >= 16:
        tb = _round_up(pl.cdiv(B, 2), 8)
        nb = pl.cdiv(B, tb)

    # Explicit scoped-VMEM budget: double-buffered activation/weight/bias/output
    # tiles (keep total well under v7x's 64 MiB physical VMEM for large tiles).
    act_bytes = jnp.dtype(x.dtype).itemsize
    w_bytes = jnp.dtype(wx.dtype).itemsize
    o_bytes = jnp.dtype(out_dtype).itemsize
    bufs = 2
    need = (bufs * tb * (in_dim + hidden_dim) * act_bytes
            + bufs * (in_dim + hidden_dim) * tn * w_bytes
            + bufs * tn * 4
            + bufs * tb * tn * o_bytes)
    vmem_limit = int(min(max(2 * need, 16 * 1024 * 1024), 100 * 1024 * 1024))

    out = pl.pallas_call(
        functools.partial(gate_kernel, activation=activation),
        out_shape=jax.ShapeDtypeStruct((B, out_pad), out_dtype),
        grid_spec=pltpu.PrefetchScalarGridSpec(
            num_scalar_prefetch=0,
            # Batch outer, N inner: activation tiles stay resident across the
            # inner N sweep (no re-DMA of x/h).
            grid=(nb, nn),
            in_specs=[
                pl.BlockSpec((tb, in_dim), lambda i, j: (i, 0)),       # x tile
                pl.BlockSpec((tb, hidden_dim), lambda i, j: (i, 0)),   # h tile
                pl.BlockSpec((in_dim, tn), lambda i, j: (0, j)),       # Wx^T tile
                pl.BlockSpec((hidden_dim, tn), lambda i, j: (0, j)),   # Wh^T tile
                pl.BlockSpec((1, tn), lambda i, j: (0, j)),            # folded bias
            ],
            out_specs=pl.BlockSpec((tb, tn), lambda i, j: (i, j)),
        ),
        compiler_params=pltpu.CompilerParams(
            dimension_semantics=("parallel", "parallel"),
            vmem_limit_bytes=vmem_limit,
        ),
    )(x, h, wx, wh, b)

    if out_pad != out_dim:
        out = out[:, :out_dim]   # strip lane padding (no-op when out_dim % 128 == 0)
    return out


if __name__ == "__main__":
    # Module hyper-parameters (small, consistent with Gate(in_dim, hidden_dim, out_dim)).
    B, in_dim, hidden_dim, out_dim = 8, 16, 32, 64
    activation = "sigmoid"

    key = jax.random.PRNGKey(0)
    kx, kh, kwx, kbx, kwh, kbh = jax.random.split(key, 6)

    x = jax.random.normal(kx, (B, in_dim), dtype=jnp.float32)
    h = jax.random.normal(kh, (B, hidden_dim), dtype=jnp.float32)

    # PyTorch Linear weight layout: (out, in).
    wx = jax.random.normal(kwx, (out_dim, in_dim), dtype=jnp.float32) * 0.1
    bx = jax.random.normal(kbx, (out_dim,), dtype=jnp.float32) * 0.1
    wh = jax.random.normal(kwh, (out_dim, hidden_dim), dtype=jnp.float32) * 0.1
    bh = jax.random.normal(kbh, (out_dim,), dtype=jnp.float32) * 0.1

    # Reference in plain JAX (same math as the PyTorch forward).
    ref = jax.nn.sigmoid(x @ wx.T + bx + h @ wh.T + bh)

    # Recommended (default) path: bf16 MXU operands, f32 accumulate/bias/sigmoid.
    p = prepare_gate_params(wx, bx, wh, bh)                 # compute_dtype=bf16
    jax.block_until_ready((p["wx"], p["wh"], p["b"]))
    fwd = jax.jit(functools.partial(
        gate_forward, out_dim=p["out_dim"], activation=activation))
    out = jax.block_until_ready(fwd(x, h, p["wx"], p["wh"], p["b"]))
    assert out.shape == (B, out_dim)
    assert jnp.allclose(out, ref, atol=2e-2, rtol=2e-2)     # bf16 operand tolerance

    # Exactness check: f32 MXU operands match the reference to 1e-5.
    p32 = prepare_gate_params(wx, bx, wh, bh, compute_dtype=jnp.float32)
    fwd32 = jax.jit(functools.partial(
        gate_forward, out_dim=p32["out_dim"], activation=activation))
    out32 = jax.block_until_ready(fwd32(x, h, p32["wx"], p32["wh"], p32["b"]))
    assert jnp.allclose(out32, ref, atol=1e-5, rtol=1e-5)

    print("KERNEL_OK")
</pallas_src>

<mosaic_0001>
module attributes {stable_mosaic.version = 11 : i64} {
  func.func @gate_kernel(%arg0: i32, %arg1: i32, %arg2: memref<8x16xf32, #tpu.memory_space<vmem>>, %arg3: memref<8x32xf32, #tpu.memory_space<vmem>>, %arg4: memref<16x128xbf16, #tpu.memory_space<vmem>>, %arg5: memref<32x128xbf16, #tpu.memory_space<vmem>>, %arg6: memref<1x128xf32, #tpu.memory_space<vmem>>, %arg7: memref<8x128xf32, #tpu.memory_space<vmem>>) attributes {dimension_semantics = [#tpu.dimension_semantics<parallel>, #tpu.dimension_semantics<parallel>], iteration_bounds = array<i64: 1, 1>, scalar_prefetch = 0 : i64, scratch_operands = 0 : i64, tpu.core_type = #tpu.core_type<tc>, window_params = [{transform_indices = @transform_0, window_bounds = array<i64: 8, 16>}, {transform_indices = @transform_1, window_bounds = array<i64: 8, 32>}, {transform_indices = @transform_2, window_bounds = array<i64: 16, 128>}, {transform_indices = @transform_3, window_bounds = array<i64: 32, 128>}, {transform_indices = @transform_4, window_bounds = array<i64: 1, 128>}, {transform_indices = @transform_5, window_bounds = array<i64: 8, 128>}]} {
    %c0 = arith.constant 0 : index
    %c0_0 = arith.constant 0 : index
    %0 = vector.load %arg2[%c0, %c0_0] : memref<8x16xf32, #tpu.memory_space<vmem>>, vector<8x16xf32>
    %1 = arith.truncf %0 : vector<8x16xf32> to vector<8x16xbf16>
    %c0_1 = arith.constant 0 : index
    %c0_2 = arith.constant 0 : index
    %2 = vector.load %arg3[%c0_1, %c0_2] : memref<8x32xf32, #tpu.memory_space<vmem>>, vector<8x32xf32>
    %3 = arith.truncf %2 : vector<8x32xf32> to vector<8x32xbf16>
    %c0_3 = arith.constant 0 : index
    %c0_4 = arith.constant 0 : index
    %4 = vector.load %arg4[%c0_3, %c0_4] : memref<16x128xbf16, #tpu.memory_space<vmem>>, vector<16x128xbf16>
    %cst = arith.constant dense<0.000000e+00> : vector<8x128xf32>
    %5 = tpu.matmul %1, %4, %cst {dimension_numbers = #tpu.dot_dimension_numbers<[1], [0], [0], [1], [0, 0, 1, 1], [], []>} : vector<8x16xbf16>, vector<16x128xbf16>, vector<8x128xf32> -> vector<8x128xf32>
    %c0_5 = arith.constant 0 : index
    %c0_6 = arith.constant 0 : index
    %6 = vector.load %arg5[%c0_5, %c0_6] : memref<32x128xbf16, #tpu.memory_space<vmem>>, vector<32x128xbf16>
    %cst_7 = arith.constant dense<0.000000e+00> : vector<8x128xf32>
    %7 = tpu.matmul %3, %6, %cst_7 {dimension_numbers = #tpu.dot_dimension_numbers<[1], [0], [0], [1], [0, 0, 1, 1], [], []>} : vector<8x32xbf16>, vector<32x128xbf16>, vector<8x128xf32> -> vector<8x128xf32>
    %8 = arith.addf %5, %7 : vector<8x128xf32>
    %c0_8 = arith.constant 0 : index
    %c0_9 = arith.constant 0 : index
    %9 = vector.load %arg6[%c0_8, %c0_9] : memref<1x128xf32, #tpu.memory_space<vmem>>, vector<1x128xf32>
    %10 = vector.broadcast %9 : vector<1x128xf32> to vector<8x128xf32>
    %11 = arith.addf %8, %10 : vector<8x128xf32>
    %12 = arith.negf %11 : vector<8x128xf32>
    %13 = math.exp %12 : vector<8x128xf32>
    %cst_10 = arith.constant 1.000000e+00 : f32
    %14 = vector.broadcast %cst_10 : f32 to vector<8x128xf32>
    %15 = arith.addf %14, %13 : vector<8x128xf32>
    %16 = arith.divf %14, %15 : vector<8x128xf32>
    %c0_11 = arith.constant 0 : index
    %c0_12 = arith.constant 0 : index
    %17 = vector.load %arg7[%c0_11, %c0_12] : memref<8x128xf32, #tpu.memory_space<vmem>>, vector<8x128xf32>
    tpu.vector_store %arg7[%c0_11, %c0_12], %16 {strides = array<i32>} : memref<8x128xf32, #tpu.memory_space<vmem>>, vector<8x128xf32>,
    return
  }
  func.func @transform_0(%arg0: i32, %arg1: i32) -> (i32, i32) {
    %c0_i32 = arith.constant 0 : i32
    %c0_i32_0 = arith.constant 0 : i32
    return %arg0, %c0_i32 : i32, i32
  }
  func.func @transform_1(%arg0: i32, %arg1: i32) -> (i32, i32) {
    %c0_i32 = arith.constant 0 : i32
    %c0_i32_0 = arith.constant 0 : i32
    return %arg0, %c0_i32 : i32, i32
  }
  func.func @transform_2(%arg0: i32, %arg1: i32) -> (i32, i32) {
    %c0_i32 = arith.constant 0 : i32
    %c0_i32_0 = arith.constant 0 : i32
    return %c0_i32, %arg1 : i32, i32
  }
  func.func @transform_3(%arg0: i32, %arg1: i32) -> (i32, i32) {
    %c0_i32 = arith.constant 0 : i32
    %c0_i32_0 = arith.constant 0 : i32
    return %c0_i32, %arg1 : i32, i32
  }
  func.func @transform_4(%arg0: i32, %arg1: i32) -> (i32, i32) {
    %c0_i32 = arith.constant 0 : i32
    %c0_i32_0 = arith.constant 0 : i32
    return %c0_i32, %arg1 : i32, i32
  }
  func.func @transform_5(%arg0: i32, %arg1: i32) -> (i32, i32) {
    %c0_i32 = arith.constant 0 : i32
    return %arg0, %arg1 : i32, i32
  }
}

</mosaic_0001>

<llo_original>
// kernel: gate_forward.1
$region0: #{gate_forward.1}
  #allocation0 [shape = 'u32[]', space=smem, size = 0x4, offset = 0x4, fixed_abs, tag = 'smem constant byte address 0x4 - core index']
  #allocation1 [shape = 'u32[144,128]{1,0:T(1,128)}', space=vmem, size = 0x12000, scoped, tag = 'internal scratch']
  %s0 = inlined_call_operand.hbm [shape: f32[8,16], index: 0, kind: input, shape index: {}]
  %s1 = inlined_call_operand.hbm [shape: f32[8,32], index: 1, kind: input, shape index: {}]
  %s2 = inlined_call_operand.hbm [shape: bf16[16,128], index: 2, kind: input, shape index: {}]
  %s3 = inlined_call_operand.hbm [shape: bf16[32,128], index: 3, kind: input, shape index: {}]
  %s4 = inlined_call_operand.vmem [shape: f32[1,128], index: 4, kind: input, shape index: {}]
  %s5 = inlined_call_operand.hbm [shape: f32[8,128], index: 5, kind: output, shape index: {}]
  %s6 = sld [smem:[#allocation0]]
  $region46: #{gate_forward.1} parent=0
    _
  %s8 = ssub.s32 1, %s6
  %s9 = scalar_select 0, %s8, %s6
  $region1: #{gate_forward.1} parent=0
    #allocation2 [shape = 'u8[4096]{0}', space=vmem, size = 0x1000, scoped, tag = 'input window, operand 0, single buffered']
    #allocation3 [shape = 's32[1]{0}', space=sflag, size = 0x4, scoped, tag = 'scoped memory for gate_forward.1']
    #allocation4 [shape = 's32[1]{0}', space=sflag, size = 0x4, scoped, tag = 'scoped memory for gate_forward.1']
    #allocation5 [shape = 'u8[4096]{0}', space=vmem, size = 0x1000, scoped, tag = 'input window, operand 1, single buffered']
    #allocation6 [shape = 's32[1]{0}', space=sflag, size = 0x4, scoped, tag = 'scoped memory for gate_forward.1']
    #allocation7 [shape = 'u8[4096]{0}', space=vmem, size = 0x1000, scoped, tag = 'input window, operand 2, single buffered']
    #allocation8 [shape = 'u8[8192]{0}', space=vmem, size = 0x2000, scoped, tag = 'input window, operand 3, single buffered']
    #allocation9 [shape = 's32[1]{0}', space=sflag, size = 0x4, scoped, tag = 'scoped memory for gate_forward.1']
    #allocation10 [shape = 'u8[4096]{0}', space=vmem, size = 0x1000, scoped, tag = 'output window, operand 0, single buffered']
    %10 = vsyncpa [#allocation3], 0
    %11 = vsyncpa [#allocation6], 0
    %12 = vsyncpa [#allocation9], 0
    %13 = vsyncpa [#allocation4], 0
    // Predicated region
    $region2: #{gate_forward.1} parent=1 // pred_check
      _
    $region3: #{gate_forward.1} parent=1 // pred_check_branch
      %15 = sbr.rel (0) target = $region5
    $region4: #{gate_forward.1} parent=1 // pred_region
      %s17 = ssub.s32 128, 128
      %18 = vsyncadd [#allocation3], %s17
      %s20 = sshll.u32 [#allocation2], 4
      %s21 = int_to_ptr.vmem [resolvable:$true] %s20
      %23 = dma.hbm_to_vmem [thread:$0]  %s0, 128, %s21, [#allocation3]
    $region5: #{gate_forward.1} parent=1 // pred_fallthru
      _
    // Predicated region
    $region6: #{gate_forward.1} parent=1 // pred_check
      _
    $region7: #{gate_forward.1} parent=1 // pred_check_branch
      %25 = sbr.rel (0) target = $region9
    $region8: #{gate_forward.1} parent=1 // pred_region
      %s27 = ssub.s32 128, 128
      %28 = vsyncadd [#allocation6], %s27
      %s30 = sshll.u32 [#allocation5], 4
      %s31 = int_to_ptr.vmem [resolvable:$true] %s30
      %33 = dma.hbm_to_vmem [thread:$0]  %s1, 128, %s31, [#allocation6]
    $region9: #{gate_forward.1} parent=1 // pred_fallthru
      _
    // Predicated region
    $region10: #{gate_forward.1} parent=1 // pred_check
      _
    $region11: #{gate_forward.1} parent=1 // pred_check_branch
      %35 = sbr.rel (0) target = $region13
    $region12: #{gate_forward.1} parent=1 // pred_region
      %s37 = ssub.s32 128, 128
      %38 = vsyncadd [#allocation6], %s37
      %s39 = sshll.u32 [#allocation7], 4
      %s40 = int_to_ptr.vmem [resolvable:$true] %s39
      %45 = dma.hbm_to_vmem [thread:$0]  %s2, 128, %s40, [#allocation6], 64, 64, 4
    $region13: #{gate_forward.1} parent=1 // pred_fallthru
      _
    // Predicated region
    $region14: #{gate_forward.1} parent=1 // pred_check
      _
    $region15: #{gate_forward.1} parent=1 // pred_check_branch
      %47 = sbr.rel (0) target = $region17
    $region16: #{gate_forward.1} parent=1 // pred_region
      %s49 = ssub.s32 256, 256
      %50 = vsyncadd [#allocation9], %s49
      %s51 = sshll.u32 [#allocation8], 4
      %s52 = int_to_ptr.vmem [resolvable:$true] %s51
      %57 = dma.hbm_to_vmem [thread:$0]  %s3, 256, %s52, [#allocation9], 64, 64, 4
    $region17: #{gate_forward.1} parent=1 // pred_fallthru
      _
    // Predicated region
    $region18: #{gate_forward.1} parent=1 // pred_check
      _
    $region19: #{gate_forward.1} parent=1 // pred_check_branch
      %59 = sbr.rel (0) target = $region21
    $region20: #{gate_forward.1} parent=1 // pred_region
      _
    $region21: #{gate_forward.1} parent=1 // pred_fallthru
      _
    // Predicated region
    $region22: #{gate_forward.1} parent=1 // pred_check
      _
    $region23: #{gate_forward.1} parent=1 // pred_check_branch
      %61 = sbr.rel (0) target = $region25
    $region24: #{gate_forward.1} parent=1 // pred_region
      %62 = dma.done [#allocation3], 128
    $region25: #{gate_forward.1} parent=1 // pred_fallthru
      _
    // Predicated region
    $region26: #{gate_forward.1} parent=1 // pred_check
      _
    $region27: #{gate_forward.1} parent=1 // pred_check_branch
      %64 = sbr.rel (0) target = $region29
    $region28: #{gate_forward.1} parent=1 // pred_region
      %65 = dma.done [#allocation6], 128
    $region29: #{gate_forward.1} parent=1 // pred_fallthru
      _
    // Predicated region
    $region30: #{gate_forward.1} parent=1 // pred_check
      _
    $region31: #{gate_forward.1} parent=1 // pred_check_branch
      %67 = sbr.rel (0) target = $region33
    $region32: #{gate_forward.1} parent=1 // pred_region
      %68 = dma.done [#allocation6], 128
    $region33: #{gate_forward.1} parent=1 // pred_fallthru
      _
    // Predicated region
    $region34: #{gate_forward.1} parent=1 // pred_check
      _
    $region35: #{gate_forward.1} parent=1 // pred_check_branch
      %70 = sbr.rel (0) target = $region37
    $region36: #{gate_forward.1} parent=1 // pred_region
      %71 = dma.done [#allocation9], 256
    $region37: #{gate_forward.1} parent=1 // pred_fallthru
      _
    %v73 = vld [vmem:[#allocation2] sm:$0xff]
    %v74 = vpack.c.bf16 %v73, %v73
    %v75 = vld [vmem:[#allocation5] sm:$0xff]
    %v76 = vpack.c.bf16 %v75, %v75
    %v77 = vld [vmem:[#allocation7] sm:$0xf]
    %v78 = vld [vmem:[#allocation7 + $0x4] sm:$0xf]
    %v79 = vld [vmem:[#allocation8] sm:$0xf]
    %v80 = vld [vmem:[#allocation8 + $0x4] sm:$0xf]
    %v81 = vld [vmem:[#allocation8 + $0x8] sm:$0xf]
    %v82 = vld [vmem:[#allocation8 + $0xc] sm:$0xf]
    %v87 = vunpack.c.l.b16 %v79
    %v88 = vunpack.c.l.b16 %v80
    %v89 = vunpack.c.l.b16 %v81
    %v90 = vunpack.c.l.b16 %v82
    %v91 = vpack.c.b16 %v88, %v87
    %v92 = vpack.c.b16 %v90, %v89
    %vm95 = vcmask 261120
    %v97 = vsel %vm95, %v76, 0
    %99 = vmatprep.subr.bf16.mxu0 0
    %100 = vmatpush1.bf16.msra.mxu0 %v91
    %101 = vmatprep.subr.bf16.mxu0 0
    %102 = vmatpush1.bf16.msra.mxu0 %v92
    %103 = vmatprep.subr.bf16.mxu0 0
    %104 = vmatpush1.bf16.msra.mxu0 0
    %105 = vmatprep.subr.bf16.mxu0 0
    %106 = vmatpush1.bf16.msra.mxu0 0
    %107 = vmatprep.subr.bf16.mxu0 0
    %108 = vmatpush1.bf16.msra.mxu0 0
    %109 = vmatprep.subr.bf16.mxu0 0
    %110 = vmatpush1.bf16.msra.mxu0 0
    %111 = vmatprep.subr.bf16.mxu0 0
    %112 = vmatpush1.bf16.msra.mxu0 0
    %113 = vmatprep.subr.bf16.mxu0 0
    %114 = vmatpush1.bf16.msra.mxu0 0
    %115 = vmatprep.subr.bf16.mxu0 0
    %116 = vmatpush1.bf16.msra.mxu0 0
    %117 = vmatprep.subr.bf16.mxu0 0
    %118 = vmatpush1.bf16.msra.mxu0 0
    %119 = vmatprep.subr.bf16.mxu0 0
    %120 = vmatpush1.bf16.msra.mxu0 0
    %121 = vmatprep.subr.bf16.mxu0 0
    %122 = vmatpush1.bf16.msra.mxu0 0
    %123 = vmatprep.subr.bf16.mxu0 0
    %124 = vmatpush1.bf16.msra.mxu0 0
    %125 = vmatprep.subr.bf16.mxu0 0
    %126 = vmatpush1.bf16.msra.mxu0 0
    %127 = vmatprep.subr.bf16.mxu0 0
    %128 = vmatpush1.bf16.msra.mxu0 0
    %129 = vmatprep.subr.bf16.mxu0 0
    %130 = vmatpush1.bf16.msra.mxu0 0
    %131 = vmatprep.mubr.bf16.mxu0 0
    %132 = vmatmul.mubr.bf16.gmra.mrb[0].mxu0 %v97
    %v133 = vpop.f32.mrb[0].mxu0
    %v134 = vadd.f32 0.0, %v133
    %v135 = vpop.f32.mrb[0].mxu0
    %v136 = vpop.f32.mrb[0].mxu0
    %v137 = vpop.f32.mrb[0].mxu0
    %138 = vdwg.mxu0
    %v141 = vunpack.c.l.b16 %v77
    %v142 = vunpack.c.l.b16 %v78
    %v143 = vpack.c.b16 %v142, %v141
    %vm145 = vcmask 130048
    %v147 = vsel %vm145, %v74, 0
    %149 = vmatprep.subr.bf16.mxu0 0
    %150 = vmatpush1.bf16.msra.mxu0 %v143
    %151 = vmatprep.subr.bf16.mxu0 0
    %152 = vmatpush1.bf16.msra.mxu0 0
    %153 = vmatprep.subr.bf16.mxu0 0
    %154 = vmatpush1.bf16.msra.mxu0 0
    %155 = vmatprep.subr.bf16.mxu0 0
    %156 = vmatpush1.bf16.msra.mxu0 0
    %157 = vmatprep.subr.bf16.mxu0 0
    %158 = vmatpush1.bf16.msra.mxu0 0
    %159 = vmatprep.subr.bf16.mxu0 0
    %160 = vmatpush1.bf16.msra.mxu0 0
    %161 = vmatprep.subr.bf16.mxu0 0
    %162 = vmatpush1.bf16.msra.mxu0 0
    %163 = vmatprep.subr.bf16.mxu0 0
    %164 = vmatpush1.bf16.msra.mxu0 0
    %165 = vmatprep.subr.bf16.mxu0 0
    %166 = vmatpush1.bf16.msra.mxu0 0
    %167 = vmatprep.subr.bf16.mxu0 0
    %168 = vmatpush1.bf16.msra.mxu0 0
    %169 = vmatprep.subr.bf16.mxu0 0
    %170 = vmatpush1.bf16.msra.mxu0 0
    %171 = vmatprep.subr.bf16.mxu0 0
    %172 = vmatpush1.bf16.msra.mxu0 0
    %173 = vmatprep.subr.bf16.mxu0 0
    %174 = vmatpush1.bf16.msra.mxu0 0
    %175 = vmatprep.subr.bf16.mxu0 0
    %176 = vmatpush1.bf16.msra.mxu0 0
    %177 = vmatprep.subr.bf16.mxu0 0
    %178 = vmatpush1.bf16.msra.mxu0 0
    %179 = vmatprep.subr.bf16.mxu0 0
    %180 = vmatpush1.bf16.msra.mxu0 0
    %181 = vmatprep.mubr.bf16.mxu0 0
    %182 = vmatmul.mubr.bf16.gmra.mrb[0].mxu0 %v147
    %v183 = vpop.f32.mrb[0].mxu0
    %v184 = vadd.f32 %v134, %v183
    %v185 = vpop.f32.mrb[0].mxu0
    %v186 = vpop.f32.mrb[0].mxu0
    %v187 = vpop.f32.mrb[0].mxu0
    %188 = vdwg.mxu0
    %v189 = vld [vmem:[%s4] sm:$0x1]
    %v191 = vlaneseq
    %v192 = vshrl.u32 %v191, 7
    %v193 = vsub.s32 0, %v192
    %v194 = vrot.slane %v189, %v193
    %v196 = vadd.f32 %v184, %v194
    %v197 = vxor.u32 %v196, 2147483648
    %v198 = vmul.f32 %v197, 1.442695
    %v199 = vpow.pop %v198
    %v200 = vadd.f32 %v199, 1.0
    %v201 = vrcp.pop %v200
    %v202 = vmul.f32 1.0, %v201
    %203 = vst [vmem:[#allocation10] sm:$0xff] %v202
    // Predicated region
    $region38: #{gate_forward.1} parent=1 // pred_check
      _
    $region39: #{gate_forward.1} parent=1 // pred_check_branch
      %205 = sbr.rel (0) target = $region41
    $region40: #{gate_forward.1} parent=1 // pred_region
      %s207 = ssub.s32 128, 128
      %208 = vsyncadd [#allocation4], %s207
      %s210 = sshll.u32 [#allocation10], 4
      %s211 = int_to_ptr.vmem [resolvable:$true] %s210
      %213 = dma.vmem_to_hbm [thread:$0]  %s211, 128, %s5, [#allocation4]
    $region41: #{gate_forward.1} parent=1 // pred_fallthru
      _
    // Predicated region
    $region42: #{gate_forward.1} parent=1 // pred_check
      _
    $region43: #{gate_forward.1} parent=1 // pred_check_branch
      %215 = sbr.rel (0) target = $region45
    $region44: #{gate_forward.1} parent=1 // pred_region
      %216 = dma.done [#allocation4], 128
    $region45: #{gate_forward.1} parent=1 // pred_fallthru
      _
    %217 = vsyncpa [#allocation3], 1
    %218 = vsyncpa [#allocation6], 1
    %219 = vsyncpa [#allocation9], 1
    %220 = vsyncpa [#allocation4], 1

</llo_original>
